<compile_context>
chip_gen: v7x
topology: tpu7x:2x2x1
jax: 0.10.0
libtpu: 0.0.40
codegen_flags: <defaults>
</compile_context>

<pallas_src>
import functools

import jax
import jax.numpy as jnp
from jax import lax
from jax.experimental import pallas as pl
from jax.experimental.pallas import tpu as pltpu

NEG_SLOPE = 0.01      # F.leaky_relu default negative_slope
NEG_INF = -1e30


def _gat_kernel(h_ref, adj_ref, w_all_ref, w_asrc_ref, w_adstT_ref, out_ref,
                *, num_heads, out_dim, tile_dst):
    # h_ref:      [N, in_dim]            f32, resident (constant index_map)
    # adj_ref:    [tile_dst, N]          int8, dst-tiled
    # w_all_ref:  [in_dim, H*out_dim]    f32, resident
    # w_asrc_ref: [H, in_dim]            f32, resident  (W_h @ a_src_h rows)
    # w_adstT_ref:[in_dim, H]            f32, resident  (W_h @ a_dst_h cols)
    # out_ref:    [tile_dst, H*out_dim]  f32
    i = pl.program_id(0)

    h_all = h_ref[...]                                        # [N, in_dim]
    row0 = pl.multiple_of(i * tile_dst, tile_dst)
    h_dst = h_ref[pl.ds(row0, tile_dst), :]                   # [tile_dst, in_dim]

    # z for every source node, all heads at once (one wide MXU matmul).
    z_all = jnp.dot(h_all, w_all_ref[...],
                    preferred_element_type=jnp.float32)       # [N, H*out_dim]
    z_bf16 = z_all.astype(jnp.bfloat16)

    # Edge logit pieces (fc + attn_fc folded): s = X @ (W a).
    # s_src directly in [H, N] row form via A.B^T (no XLU transpose).
    s_src = lax.dot_general(w_asrc_ref[...], h_all,
                            dimension_numbers=(((1,), (1,)), ((), ())),
                            preferred_element_type=jnp.float32)  # [H, N]
    s_dst = jnp.dot(h_dst, w_adstT_ref[...],
                    preferred_element_type=jnp.float32)          # [tile_dst, H]

    # Additive mask bias from int8 adjacency, built once for all heads.
    adj_f = adj_ref[...].astype(jnp.float32)                  # [tile_dst, N]
    bias = jnp.where(adj_f > 0, 0.0, NEG_INF)

    head_outs = []
    for hd in range(num_heads):
        e = s_dst[:, hd:hd + 1] + s_src[hd:hd + 1, :]         # [tile_dst, N]
        e = jnp.where(e >= 0, e, NEG_SLOPE * e)               # leaky_relu
        e = e + bias                                          # mask non-edges
        m = jnp.max(e, axis=-1, keepdims=True)
        p = jnp.exp(e - m)                                    # masked -> exactly 0
        denom = jnp.sum(p, axis=-1, keepdims=True)            # >= 1 (self-loops)
        alpha = (p * pl.reciprocal(denom, approx=True)).astype(jnp.bfloat16)
        zh = z_bf16[:, hd * out_dim:(hd + 1) * out_dim]       # [N, out_dim]
        head_outs.append(jnp.dot(alpha, zh,
                                 preferred_element_type=jnp.float32))

    # Single lane-dense store of the concatenated ('cat') result.
    out_ref[...] = jnp.concatenate(head_outs, axis=1).astype(out_ref.dtype)


def multi_head_gat(h, adj, W, a_src, a_dst, *, tile_dst=None):
    """h: [N, in_dim], adj: [N, N] (0/1, with self-loops),
    W: [H, in_dim, out_dim], a_src/a_dst: [H, out_dim].
    Returns [N, H*out_dim]  (merge='cat')."""
    H, in_dim, out_dim = W.shape
    N = h.shape[0]
    if tile_dst is None:
        tile_dst = min(N, 256)
    assert N % tile_dst == 0
    assert tile_dst % 8 == 0 or tile_dst == N

    # Host-side (one-time, tiny) weight repacking.
    W_all = jnp.transpose(W, (1, 0, 2)).reshape(in_dim, H * out_dim)
    w_asrc = jnp.einsum('hio,ho->hi', W, a_src)     # [H, in_dim]
    w_adstT = jnp.einsum('hio,ho->ih', W, a_dst)    # [in_dim, H]
    adj_i8 = (adj > 0).astype(jnp.int8)

    kernel = functools.partial(_gat_kernel, num_heads=H, out_dim=out_dim,
                               tile_dst=tile_dst)

    out = pl.pallas_call(
        kernel,
        out_shape=jax.ShapeDtypeStruct((N, H * out_dim), jnp.float32),
        grid_spec=pltpu.PrefetchScalarGridSpec(
            num_scalar_prefetch=0,
            grid=(N // tile_dst,),
            in_specs=[
                pl.BlockSpec((N, in_dim), lambda i: (0, 0)),            # h (resident)
                pl.BlockSpec((tile_dst, N), lambda i: (i, 0)),          # adj int8 tile
                pl.BlockSpec((in_dim, H * out_dim), lambda i: (0, 0)),  # W_all
                pl.BlockSpec((H, in_dim), lambda i: (0, 0)),            # w_asrc
                pl.BlockSpec((in_dim, H), lambda i: (0, 0)),            # w_adst^T
            ],
            out_specs=pl.BlockSpec((tile_dst, H * out_dim), lambda i: (i, 0)),
        ),
        compiler_params=pltpu.CompilerParams(
            dimension_semantics=("parallel",)),
    )(h, adj_i8, W_all, w_asrc, w_adstT)
    return out


def ref_forward(h, adj, W, a_src, a_dst):
    """Pure-JAX f32 reference mirroring the PyTorch/DGL semantics."""
    outs = []
    for hd in range(W.shape[0]):
        z = h @ W[hd]
        s_src = z @ a_src[hd]
        s_dst = z @ a_dst[hd]
        e = s_dst[:, None] + s_src[None, :]
        e = jnp.where(e >= 0, e, NEG_SLOPE * e)
        e = jnp.where(adj > 0, e, NEG_INF)
        e = e - e.max(-1, keepdims=True)
        p = jnp.exp(e) * adj
        alpha = p / p.sum(-1, keepdims=True)
        outs.append(alpha @ z)
    return jnp.concatenate(outs, axis=1)


if __name__ == "__main__":
    N, in_dim, out_dim, num_heads = 16, 8, 8, 4
    tile_dst = 8   # 2 dst tiles -> exercises the tiled grid

    key = jax.random.PRNGKey(0)
    k_h, k_adj, k_w, k_a = jax.random.split(key, 4)

    # Node features
    h = jax.random.normal(k_h, (N, in_dim), dtype=jnp.float32)

    # Deterministic random graph + self-loops (every node has an in-edge)
    adj = (jax.random.uniform(k_adj, (N, N)) < 0.3).astype(jnp.float32)
    adj = jnp.maximum(adj, jnp.eye(N, dtype=jnp.float32))

    # Per-head fc weights: torch fc weight is [out_dim, in_dim]; we store the
    # transposed [in_dim, out_dim] so z = h @ W.
    W = jax.random.normal(k_w, (num_heads, in_dim, out_dim),
                          dtype=jnp.float32) * (1.0 / jnp.sqrt(in_dim))

    # Per-head attn_fc weight [1, 2*out_dim] split into src/dst halves.
    a_full = jax.random.normal(k_a, (num_heads, 2 * out_dim),
                               dtype=jnp.float32) * (1.0 / jnp.sqrt(2 * out_dim))
    a_src = a_full[:, :out_dim]
    a_dst = a_full[:, out_dim:]

    out = multi_head_gat(h, adj, W, a_src, a_dst, tile_dst=tile_dst)
    out = jax.block_until_ready(out)

    ref = ref_forward(h, adj, W, a_src, a_dst)
    assert out.shape == (N, num_heads * out_dim)
    # bf16 aggregation matmul + approx reciprocal -> loose-but-meaningful tol.
    assert jnp.allclose(out, ref, atol=3e-2, rtol=3e-2), (
        float(jnp.max(jnp.abs(out - ref))))

    print("KERNEL_OK")
</pallas_src>

<mosaic_0001>
module attributes {stable_mosaic.version = 11 : i64} {
  func.func @_gat_kernel(%arg0: i32, %arg1: memref<16x8xf32, #tpu.memory_space<vmem>>, %arg2: memref<8x16xi8, #tpu.memory_space<vmem>>, %arg3: memref<8x32xf32, #tpu.memory_space<vmem>>, %arg4: memref<4x8xf32, #tpu.memory_space<vmem>>, %arg5: memref<8x4xf32, #tpu.memory_space<vmem>>, %arg6: memref<8x32xf32, #tpu.memory_space<vmem>>) attributes {dimension_semantics = [#tpu.dimension_semantics<parallel>], iteration_bounds = array<i64: 2>, scalar_prefetch = 0 : i64, scratch_operands = 0 : i64, tpu.core_type = #tpu.core_type<tc>, window_params = [{pipeline_mode = #tpu.pipeline_mode<synchronous>, transform_indices = @transform_0, window_bounds = array<i64: 16, 8>}, {transform_indices = @transform_1, window_bounds = array<i64: 8, 16>}, {pipeline_mode = #tpu.pipeline_mode<synchronous>, transform_indices = @transform_2, window_bounds = array<i64: 8, 32>}, {pipeline_mode = #tpu.pipeline_mode<synchronous>, transform_indices = @transform_3, window_bounds = array<i64: 4, 8>}, {pipeline_mode = #tpu.pipeline_mode<synchronous>, transform_indices = @transform_4, window_bounds = array<i64: 8, 4>}, {transform_indices = @transform_5, window_bounds = array<i64: 8, 32>}]} {
    %c0 = arith.constant 0 : index
    %c0_0 = arith.constant 0 : index
    %0 = vector.load %arg1[%c0, %c0_0] : memref<16x8xf32, #tpu.memory_space<vmem>>, vector<16x8xf32>
    %c8_i32 = arith.constant 8 : i32
    %1 = arith.muli %arg0, %c8_i32 : i32
    %2 = tpu.assume_multiple %1, 8 : i32
    %3 = arith.index_cast %2 : i32 to index
    %c0_1 = arith.constant 0 : index
    %4 = vector.load %arg1[%3, %c0_1] : memref<16x8xf32, #tpu.memory_space<vmem>>, vector<8x8xf32>
    %c0_2 = arith.constant 0 : index
    %c0_3 = arith.constant 0 : index
    %5 = vector.load %arg3[%c0_2, %c0_3] : memref<8x32xf32, #tpu.memory_space<vmem>>, vector<8x32xf32>
    %cst = arith.constant dense<0.000000e+00> : vector<16x32xf32>
    %6 = tpu.matmul %0, %5, %cst {dimension_numbers = #tpu.dot_dimension_numbers<[1], [0], [0], [1], [0, 0, 1, 1], [], []>} : vector<16x8xf32>, vector<8x32xf32>, vector<16x32xf32> -> vector<16x32xf32>
    %7 = arith.truncf %6 : vector<16x32xf32> to vector<16x32xbf16>
    %c0_4 = arith.constant 0 : index
    %c0_5 = arith.constant 0 : index
    %8 = vector.load %arg4[%c0_4, %c0_5] : memref<4x8xf32, #tpu.memory_space<vmem>>, vector<4x8xf32>
    %cst_6 = arith.constant dense<0.000000e+00> : vector<4x16xf32>
    %9 = tpu.matmul %8, %0, %cst_6 {dimension_numbers = #tpu.dot_dimension_numbers<[1], [1], [0], [0], [0, 0, 1, 0], [], []>} : vector<4x8xf32>, vector<16x8xf32>, vector<4x16xf32> -> vector<4x16xf32>
    %c0_7 = arith.constant 0 : index
    %c0_8 = arith.constant 0 : index
    %10 = vector.load %arg5[%c0_7, %c0_8] : memref<8x4xf32, #tpu.memory_space<vmem>>, vector<8x4xf32>
    %cst_9 = arith.constant dense<0.000000e+00> : vector<8x4xf32>
    %11 = tpu.matmul %4, %10, %cst_9 {dimension_numbers = #tpu.dot_dimension_numbers<[1], [0], [0], [1], [0, 0, 1, 1], [], []>} : vector<8x8xf32>, vector<8x4xf32>, vector<8x4xf32> -> vector<8x4xf32>
    %c0_10 = arith.constant 0 : index
    %c0_11 = arith.constant 0 : index
    %12 = vector.load %arg2[%c0_10, %c0_11] : memref<8x16xi8, #tpu.memory_space<vmem>>, vector<8x16xi8>
    %13 = arith.sitofp %12 : vector<8x16xi8> to vector<8x16xf32>
    %cst_12 = arith.constant 0.000000e+00 : f32
    %14 = vector.broadcast %cst_12 : f32 to vector<8x16xf32>
    %15 = arith.cmpf ogt, %13, %14 : vector<8x16xf32>
    %cst_13 = arith.constant 0.000000e+00 : f32
    %cst_14 = arith.constant -1.000000e+30 : f32
    %16 = vector.broadcast %cst_13 : f32 to vector<8x16xf32>
    %17 = vector.broadcast %cst_14 : f32 to vector<8x16xf32>
    %18 = arith.select %15, %16, %17 : vector<8x16xi1>, vector<8x16xf32>
    %19 = vector.extract_strided_slice %11 {offsets = [0, 0], sizes = [8, 1], strides = [1, 1]} : vector<8x4xf32> to vector<8x1xf32>
    %20 = vector.extract_strided_slice %9 {offsets = [0, 0], sizes = [1, 16], strides = [1, 1]} : vector<4x16xf32> to vector<1x16xf32>
    %21 = vector.broadcast %19 : vector<8x1xf32> to vector<8x16xf32>
    %22 = vector.broadcast %20 : vector<1x16xf32> to vector<8x16xf32>
    %23 = arith.addf %21, %22 : vector<8x16xf32>
    %cst_15 = arith.constant 0.000000e+00 : f32
    %24 = vector.broadcast %cst_15 : f32 to vector<8x16xf32>
    %25 = arith.cmpf oge, %23, %24 : vector<8x16xf32>
    %cst_16 = arith.constant 0.00999999977 : f32
    %26 = vector.broadcast %cst_16 : f32 to vector<8x16xf32>
    %27 = arith.mulf %26, %23 : vector<8x16xf32>
    %28 = arith.select %25, %23, %27 : vector<8x16xi1>, vector<8x16xf32>
    %29 = arith.addf %28, %18 : vector<8x16xf32>
    %cst_17 = arith.constant dense<0xFF800000> : vector<8xf32>
    %30 = vector.multi_reduction <maximumf>, %29, %cst_17 [1] : vector<8x16xf32> to vector<8xf32>
    %31 = vector.shape_cast %30 : vector<8xf32> to vector<8x1xf32>
    %32 = vector.broadcast %31 : vector<8x1xf32> to vector<8x16xf32>
    %33 = arith.subf %29, %32 : vector<8x16xf32>
    %34 = math.exp %33 : vector<8x16xf32>
    %cst_18 = arith.constant dense<0.000000e+00> : vector<8xf32>
    %35 = vector.multi_reduction <add>, %34, %cst_18 [1] : vector<8x16xf32> to vector<8xf32>
    %36 = vector.shape_cast %35 : vector<8xf32> to vector<8x1xf32>
    %37 = tpu.reciprocal %36 {approx = true} : vector<8x1xf32> -> vector<8x1xf32>
    %38 = vector.broadcast %37 : vector<8x1xf32> to vector<8x16xf32>
    %39 = arith.mulf %34, %38 : vector<8x16xf32>
    %40 = arith.truncf %39 : vector<8x16xf32> to vector<8x16xbf16>
    %41 = vector.extract_strided_slice %7 {offsets = [0, 0], sizes = [16, 8], strides = [1, 1]} : vector<16x32xbf16> to vector<16x8xbf16>
    %cst_19 = arith.constant dense<0.000000e+00> : vector<8x8xf32>
    %42 = tpu.matmul %40, %41, %cst_19 {dimension_numbers = #tpu.dot_dimension_numbers<[1], [0], [0], [1], [0, 0, 1, 1], [], []>} : vector<8x16xbf16>, vector<16x8xbf16>, vector<8x8xf32> -> vector<8x8xf32>
    %43 = vector.extract_strided_slice %11 {offsets = [0, 1], sizes = [8, 1], strides = [1, 1]} : vector<8x4xf32> to vector<8x1xf32>
    %44 = vector.extract_strided_slice %9 {offsets = [1, 0], sizes = [1, 16], strides = [1, 1]} : vector<4x16xf32> to vector<1x16xf32>
    %45 = vector.broadcast %43 : vector<8x1xf32> to vector<8x16xf32>
    %46 = vector.broadcast %44 : vector<1x16xf32> to vector<8x16xf32>
    %47 = arith.addf %45, %46 : vector<8x16xf32>
    %cst_20 = arith.constant 0.000000e+00 : f32
    %48 = vector.broadcast %cst_20 : f32 to vector<8x16xf32>
    %49 = arith.cmpf oge, %47, %48 : vector<8x16xf32>
    %cst_21 = arith.constant 0.00999999977 : f32
    %50 = vector.broadcast %cst_21 : f32 to vector<8x16xf32>
    %51 = arith.mulf %50, %47 : vector<8x16xf32>
    %52 = arith.select %49, %47, %51 : vector<8x16xi1>, vector<8x16xf32>
    %53 = arith.addf %52, %18 : vector<8x16xf32>
    %cst_22 = arith.constant dense<0xFF800000> : vector<8xf32>
    %54 = vector.multi_reduction <maximumf>, %53, %cst_22 [1] : vector<8x16xf32> to vector<8xf32>
    %55 = vector.shape_cast %54 : vector<8xf32> to vector<8x1xf32>
    %56 = vector.broadcast %55 : vector<8x1xf32> to vector<8x16xf32>
    %57 = arith.subf %53, %56 : vector<8x16xf32>
    %58 = math.exp %57 : vector<8x16xf32>
    %cst_23 = arith.constant dense<0.000000e+00> : vector<8xf32>
    %59 = vector.multi_reduction <add>, %58, %cst_23 [1] : vector<8x16xf32> to vector<8xf32>
    %60 = vector.shape_cast %59 : vector<8xf32> to vector<8x1xf32>
    %61 = tpu.reciprocal %60 {approx = true} : vector<8x1xf32> -> vector<8x1xf32>
    %62 = vector.broadcast %61 : vector<8x1xf32> to vector<8x16xf32>
    %63 = arith.mulf %58, %62 : vector<8x16xf32>
    %64 = arith.truncf %63 : vector<8x16xf32> to vector<8x16xbf16>
    %65 = vector.extract_strided_slice %7 {offsets = [0, 8], sizes = [16, 8], strides = [1, 1]} : vector<16x32xbf16> to vector<16x8xbf16>
    %cst_24 = arith.constant dense<0.000000e+00> : vector<8x8xf32>
    %66 = tpu.matmul %64, %65, %cst_24 {dimension_numbers = #tpu.dot_dimension_numbers<[1], [0], [0], [1], [0, 0, 1, 1], [], []>} : vector<8x16xbf16>, vector<16x8xbf16>, vector<8x8xf32> -> vector<8x8xf32>
    %67 = vector.extract_strided_slice %11 {offsets = [0, 2], sizes = [8, 1], strides = [1, 1]} : vector<8x4xf32> to vector<8x1xf32>
    %68 = vector.extract_strided_slice %9 {offsets = [2, 0], sizes = [1, 16], strides = [1, 1]} : vector<4x16xf32> to vector<1x16xf32>
    %69 = vector.broadcast %67 : vector<8x1xf32> to vector<8x16xf32>
    %70 = vector.broadcast %68 : vector<1x16xf32> to vector<8x16xf32>
    %71 = arith.addf %69, %70 : vector<8x16xf32>
    %cst_25 = arith.constant 0.000000e+00 : f32
    %72 = vector.broadcast %cst_25 : f32 to vector<8x16xf32>
    %73 = arith.cmpf oge, %71, %72 : vector<8x16xf32>
    %cst_26 = arith.constant 0.00999999977 : f32
    %74 = vector.broadcast %cst_26 : f32 to vector<8x16xf32>
    %75 = arith.mulf %74, %71 : vector<8x16xf32>
    %76 = arith.select %73, %71, %75 : vector<8x16xi1>, vector<8x16xf32>
    %77 = arith.addf %76, %18 : vector<8x16xf32>
    %cst_27 = arith.constant dense<0xFF800000> : vector<8xf32>
    %78 = vector.multi_reduction <maximumf>, %77, %cst_27 [1] : vector<8x16xf32> to vector<8xf32>
    %79 = vector.shape_cast %78 : vector<8xf32> to vector<8x1xf32>
    %80 = vector.broadcast %79 : vector<8x1xf32> to vector<8x16xf32>
    %81 = arith.subf %77, %80 : vector<8x16xf32>
    %82 = math.exp %81 : vector<8x16xf32>
    %cst_28 = arith.constant dense<0.000000e+00> : vector<8xf32>
    %83 = vector.multi_reduction <add>, %82, %cst_28 [1] : vector<8x16xf32> to vector<8xf32>
    %84 = vector.shape_cast %83 : vector<8xf32> to vector<8x1xf32>
    %85 = tpu.reciprocal %84 {approx = true} : vector<8x1xf32> -> vector<8x1xf32>
    %86 = vector.broadcast %85 : vector<8x1xf32> to vector<8x16xf32>
    %87 = arith.mulf %82, %86 : vector<8x16xf32>
    %88 = arith.truncf %87 : vector<8x16xf32> to vector<8x16xbf16>
    %89 = vector.extract_strided_slice %7 {offsets = [0, 16], sizes = [16, 8], strides = [1, 1]} : vector<16x32xbf16> to vector<16x8xbf16>
    %cst_29 = arith.constant dense<0.000000e+00> : vector<8x8xf32>
    %90 = tpu.matmul %88, %89, %cst_29 {dimension_numbers = #tpu.dot_dimension_numbers<[1], [0], [0], [1], [0, 0, 1, 1], [], []>} : vector<8x16xbf16>, vector<16x8xbf16>, vector<8x8xf32> -> vector<8x8xf32>
    %91 = vector.extract_strided_slice %11 {offsets = [0, 3], sizes = [8, 1], strides = [1, 1]} : vector<8x4xf32> to vector<8x1xf32>
    %92 = vector.extract_strided_slice %9 {offsets = [3, 0], sizes = [1, 16], strides = [1, 1]} : vector<4x16xf32> to vector<1x16xf32>
    %93 = vector.broadcast %91 : vector<8x1xf32> to vector<8x16xf32>
    %94 = vector.broadcast %92 : vector<1x16xf32> to vector<8x16xf32>
    %95 = arith.addf %93, %94 : vector<8x16xf32>
    %cst_30 = arith.constant 0.000000e+00 : f32
    %96 = vector.broadcast %cst_30 : f32 to vector<8x16xf32>
    %97 = arith.cmpf oge, %95, %96 : vector<8x16xf32>
    %cst_31 = arith.constant 0.00999999977 : f32
    %98 = vector.broadcast %cst_31 : f32 to vector<8x16xf32>
    %99 = arith.mulf %98, %95 : vector<8x16xf32>
    %100 = arith.select %97, %95, %99 : vector<8x16xi1>, vector<8x16xf32>
    %101 = arith.addf %100, %18 : vector<8x16xf32>
    %cst_32 = arith.constant dense<0xFF800000> : vector<8xf32>
    %102 = vector.multi_reduction <maximumf>, %101, %cst_32 [1] : vector<8x16xf32> to vector<8xf32>
    %103 = vector.shape_cast %102 : vector<8xf32> to vector<8x1xf32>
    %104 = vector.broadcast %103 : vector<8x1xf32> to vector<8x16xf32>
    %105 = arith.subf %101, %104 : vector<8x16xf32>
    %106 = math.exp %105 : vector<8x16xf32>
    %cst_33 = arith.constant dense<0.000000e+00> : vector<8xf32>
    %107 = vector.multi_reduction <add>, %106, %cst_33 [1] : vector<8x16xf32> to vector<8xf32>
    %108 = vector.shape_cast %107 : vector<8xf32> to vector<8x1xf32>
    %109 = tpu.reciprocal %108 {approx = true} : vector<8x1xf32> -> vector<8x1xf32>
    %110 = vector.broadcast %109 : vector<8x1xf32> to vector<8x16xf32>
    %111 = arith.mulf %106, %110 : vector<8x16xf32>
    %112 = arith.truncf %111 : vector<8x16xf32> to vector<8x16xbf16>
    %113 = vector.extract_strided_slice %7 {offsets = [0, 24], sizes = [16, 8], strides = [1, 1]} : vector<16x32xbf16> to vector<16x8xbf16>
    %cst_34 = arith.constant dense<0.000000e+00> : vector<8x8xf32>
    %114 = tpu.matmul %112, %113, %cst_34 {dimension_numbers = #tpu.dot_dimension_numbers<[1], [0], [0], [1], [0, 0, 1, 1], [], []>} : vector<8x16xbf16>, vector<16x8xbf16>, vector<8x8xf32> -> vector<8x8xf32>
    %115 = tpu.concatenate %42, %66, %90, %114 in 1 : vector<8x8xf32>, vector<8x8xf32>, vector<8x8xf32>, vector<8x8xf32> -> vector<8x32xf32>
    %c0_35 = arith.constant 0 : index
    %c0_36 = arith.constant 0 : index
    %116 = vector.load %arg6[%c0_35, %c0_36] : memref<8x32xf32, #tpu.memory_space<vmem>>, vector<8x32xf32>
    tpu.vector_store %arg6[%c0_35, %c0_36], %115 {strides = array<i32>} : memref<8x32xf32, #tpu.memory_space<vmem>>, vector<8x32xf32>,
    return
  }
  func.func @transform_0(%arg0: i32) -> (i32, i32) {
    %c0_i32 = arith.constant 0 : i32
    %c0_i32_0 = arith.constant 0 : i32
    %c0_i32_1 = arith.constant 0 : i32
    return %c0_i32, %c0_i32_0 : i32, i32
  }
  func.func @transform_1(%arg0: i32) -> (i32, i32) {
    %c0_i32 = arith.constant 0 : i32
    %c0_i32_0 = arith.constant 0 : i32
    return %arg0, %c0_i32 : i32, i32
  }
  func.func @transform_2(%arg0: i32) -> (i32, i32) {
    %c0_i32 = arith.constant 0 : i32
    %c0_i32_0 = arith.constant 0 : i32
    %c0_i32_1 = arith.constant 0 : i32
    return %c0_i32, %c0_i32_0 : i32, i32
  }
  func.func @transform_3(%arg0: i32) -> (i32, i32) {
    %c0_i32 = arith.constant 0 : i32
    %c0_i32_0 = arith.constant 0 : i32
    %c0_i32_1 = arith.constant 0 : i32
    return %c0_i32, %c0_i32_0 : i32, i32
  }
  func.func @transform_4(%arg0: i32) -> (i32, i32) {
    %c0_i32 = arith.constant 0 : i32
    %c0_i32_0 = arith.constant 0 : i32
    %c0_i32_1 = arith.constant 0 : i32
    return %c0_i32, %c0_i32_0 : i32, i32
  }
  func.func @transform_5(%arg0: i32) -> (i32, i32) {
    %c0_i32 = arith.constant 0 : i32
    %c0_i32_0 = arith.constant 0 : i32
    return %arg0, %c0_i32 : i32, i32
  }
}

</mosaic_0001>

<llo_original>
// kernel: tpu_custom_call.1
$region0: #{tpu_custom_call.1}
  #allocation0 [shape = 'u32[]', space=smem, size = 0x4, offset = 0x4, fixed_abs, tag = 'smem constant byte address 0x4 - core index']
  #allocation1 [shape = 'u32[144,128]{1,0:T(1,128)}', space=vmem, size = 0x12000, scoped, tag = 'internal scratch']
  %s0 = inlined_call_operand.vmem [shape: f32[16,8], index: 0, kind: input, shape index: {}]
  %s1 = inlined_call_operand.vmem [shape: s8[16,16], index: 1, kind: input, shape index: {}]
  %s2 = inlined_call_operand.vmem [shape: f32[8,32], index: 2, kind: input, shape index: {}]
  %s3 = inlined_call_operand.vmem [shape: f32[4,8], index: 3, kind: input, shape index: {}]
  %s4 = inlined_call_operand.vmem [shape: f32[8,4], index: 4, kind: input, shape index: {}]
  %s5 = inlined_call_operand.hbm [shape: f32[16,32], index: 5, kind: output, shape index: {}]
  %s6 = sld [smem:[#allocation0]]
  $region53: #{tpu_custom_call.1} parent=0
    _
  %s8 = ssub.s32 1, %s6
  %s9 = scalar_select 0, %s8, %s6
  $region1: #{tpu_custom_call.1} parent=0
    #allocation2 [shape = 'u8[8192]{0}', space=vmem, size = 0x2000, scoped, tag = 'output window, operand 0']
    #allocation3 [shape = 's32[2]{0}', space=sflag, size = 0x8, scoped, tag = 'scoped memory for tpu_custom_call.1']
    %10 = vsyncpa [#allocation3], 0
    %s11 = scalar_lea.sflag [#allocation3], 1
    %12 = vsyncpa %s11, 0
    loop: start=0, step=1, limit=4
    $region2: #{tpu_custom_call.1} parent=1 // loop_pre_header
      _
    $region3: #{tpu_custom_call.1} parent=1 // loop_header
      %s14 = sphi 0, %s18
      %p15 = scmp.ge.s32.totalorder %s14, 4
      %s22 = sphi 0, %s22
      %s24 = sphi 0, %s22
      %s25 = sphi 0, %s24
      %s39 = sphi 0, %s25
      %s45 = sphi 0, %s47
      %s48 = sphi 0, %s45
      %s49 = sphi 0, %s48
      %s65 = sphi 0, %s49
      %s69 = sphi 0, %s69
      %s71 = sphi 0, %s69
      %s72 = sphi 0, %s71
      %s86 = sphi 0, %s72
      %s90 = sphi 0, %s90
      %s92 = sphi 0, %s90
      %s93 = sphi 0, %s92
      %s107 = sphi 0, %s93
      %s111 = sphi 0, %s111
      %s113 = sphi 0, %s111
      %s114 = sphi 0, %s113
      %s128 = sphi 0, %s114
      %s134 = sphi 0, %s136
      %s137 = sphi 0, %s134
      %s138 = sphi 0, %s137
      %s154 = sphi 0, %s138
    $region4: #{tpu_custom_call.1} parent=1 // loop_header_branch
      %17 = sbr.rel (%p15) target = $region8
    $region5: #{tpu_custom_call.1} parent=1 // loop_body
      %s19 = ssub.s32 %s14, 1
      %s20 = ssub.s32 %s14, 2
      %s21 = sadd.s32 %s14, 1
      %s23 = sadd.s32 %s22, 1
      %p26 = scmp.eq.s32.totalorder %s14, 1
      %p27 = scmp.ne.s32.totalorder %s22, %s24
      %p28 = scmp.eq.s32.totalorder %s14, 0
      %p29 = por %p27, %p28
      %p30 = scmp.ne.s32.totalorder %s22, %s24
      %p31 = scmp.eq.s32.totalorder %s19, 1
      %p32 = por %p30, %p31
      %p33 = scmp.ne.s32.totalorder %s24, %s25
      %p34 = scmp.eq.s32.totalorder %s19, 0
      %p35 = por %p33, %p34
      %p36 = scmp.ne.s32.totalorder %s24, %s25
      %p37 = scmp.eq.s32.totalorder %s20, 1
      %p38 = por %p36, %p37
      %p40 = scmp.ne.s32.totalorder %s25, %s39
      %p41 = scmp.eq.s32.totalorder %s20, 0
      %p42 = por %p40, %p41
      %s43 = ssub.s32 %s14, %s21
      %p44 = scmp.eq.s32.totalorder %s43, 0
      %s46 = sadd.s32 %s45, 1
      %s47 = scalar_select %p44, %s45, %s46
      %p50 = pneg %p44
      %p51 = scmp.eq.s32.totalorder %s14, 1
      %p52 = por %p50, %p51
      %p53 = scmp.ne.s32.totalorder %s45, %s48
      %p54 = scmp.eq.s32.totalorder %s14, 0
      %p55 = por %p53, %p54
      %p56 = scmp.ne.s32.totalorder %s45, %s48
      %p57 = scmp.eq.s32.totalorder %s19, 1
      %p58 = por %p56, %p57
      %p59 = scmp.ne.s32.totalorder %s48, %s49
      %p60 = scmp.eq.s32.totalorder %s19, 0
      %p61 = por %p59, %p60
      %p62 = scmp.ne.s32.totalorder %s48, %s49
      %p63 = scmp.eq.s32.totalorder %s20, 1
      %p64 = por %p62, %p63
      %p66 = scmp.ne.s32.totalorder %s49, %s65
      %p67 = scmp.eq.s32.totalorder %s20, 0
      %p68 = por %p66, %p67
      %s70 = sadd.s32 %s69, 1
      %p73 = scmp.eq.s32.totalorder %s14, 1
      %p74 = scmp.ne.s32.totalorder %s69, %s71
      %p75 = scmp.eq.s32.totalorder %s14, 0
      %p76 = por %p74, %p75
      %p77 = scmp.ne.s32.totalorder %s69, %s71
      %p78 = scmp.eq.s32.totalorder %s19, 1
      %p79 = por %p77, %p78
      %p80 = scmp.ne.s32.totalorder %s71, %s72
      %p81 = scmp.eq.s32.totalorder %s19, 0
      %p82 = por %p80, %p81
      %p83 = scmp.ne.s32.totalorder %s71, %s72
      %p84 = scmp.eq.s32.totalorder %s20, 1
      %p85 = por %p83, %p84
      %p87 = scmp.ne.s32.totalorder %s72, %s86
      %p88 = scmp.eq.s32.totalorder %s20, 0
      %p89 = por %p87, %p88
      %s91 = sadd.s32 %s90, 1
      %p94 = scmp.eq.s32.totalorder %s14, 1
      %p95 = scmp.ne.s32.totalorder %s90, %s92
      %p96 = scmp.eq.s32.totalorder %s14, 0
      %p97 = por %p95, %p96
      %p98 = scmp.ne.s32.totalorder %s90, %s92
      %p99 = scmp.eq.s32.totalorder %s19, 1
      %p100 = por %p98, %p99
      %p101 = scmp.ne.s32.totalorder %s92, %s93
      %p102 = scmp.eq.s32.totalorder %s19, 0
      %p103 = por %p101, %p102
      %p104 = scmp.ne.s32.totalorder %s92, %s93
      %p105 = scmp.eq.s32.totalorder %s20, 1
      %p106 = por %p104, %p105
      %p108 = scmp.ne.s32.totalorder %s93, %s107
      %p109 = scmp.eq.s32.totalorder %s20, 0
      %p110 = por %p108, %p109
      %s112 = sadd.s32 %s111, 1
      %p115 = scmp.eq.s32.totalorder %s14, 1
      %p116 = scmp.ne.s32.totalorder %s111, %s113
      %p117 = scmp.eq.s32.totalorder %s14, 0
      %p118 = por %p116, %p117
      %p119 = scmp.ne.s32.totalorder %s111, %s113
      %p120 = scmp.eq.s32.totalorder %s19, 1
      %p121 = por %p119, %p120
      %p122 = scmp.ne.s32.totalorder %s113, %s114
      %p123 = scmp.eq.s32.totalorder %s19, 0
      %p124 = por %p122, %p123
      %p125 = scmp.ne.s32.totalorder %s113, %s114
      %p126 = scmp.eq.s32.totalorder %s20, 1
      %p127 = por %p125, %p126
      %p129 = scmp.ne.s32.totalorder %s114, %s128
      %p130 = scmp.eq.s32.totalorder %s20, 0
      %p131 = por %p129, %p130
      %s132 = ssub.s32 %s14, %s21
      %p133 = scmp.eq.s32.totalorder %s132, 0
      %s135 = sadd.s32 %s134, 1
      %s136 = scalar_select %p133, %s134, %s135
      %p139 = pneg %p133
      %p140 = scmp.eq.s32.totalorder %s14, 1
      %p141 = por %p139, %p140
      %p142 = scmp.ne.s32.totalorder %s134, %s137
      %p143 = scmp.eq.s32.totalorder %s14, 0
      %p144 = por %p142, %p143
      %p145 = scmp.ne.s32.totalorder %s134, %s137
      %p146 = scmp.eq.s32.totalorder %s19, 1
      %p147 = por %p145, %p146
      %p148 = scmp.ne.s32.totalorder %s137, %s138
      %p149 = scmp.eq.s32.totalorder %s19, 0
      %p150 = por %p148, %p149
      %p151 = scmp.ne.s32.totalorder %s137, %s138
      %p152 = scmp.eq.s32.totalorder %s20, 1
      %p153 = por %p151, %p152
      %p155 = scmp.ne.s32.totalorder %s138, %s154
      %p156 = scmp.eq.s32.totalorder %s20, 0
      %p157 = por %p155, %p156
      %p158 = scmp.le.s32.totalorder 1, %s14
      %p159 = scmp.lt.s32.totalorder %s14, 3
      %p160 = pnand %p158, %p159
      %p161 = pneg %p160
      // Predicated region
      $region9: #{tpu_custom_call.1} parent=5 // pred_check
        _
      $region10: #{tpu_custom_call.1} parent=5 // pred_check_branch
        %163 = sbr.rel (%p160) target = $region12
      $region11: #{tpu_custom_call.1} parent=5 // pred_region
        %s164 = ssub.s32 %s14, 1
        // Predicated region
        $region13: #{tpu_custom_call.1} parent=11 // pred_check
          %p165 = pneg %p35
        $region14: #{tpu_custom_call.1} parent=11 // pred_check_branch
          %167 = sbr.rel (%p165) target = $region16
        $region15: #{tpu_custom_call.1} parent=11 // pred_region
          _
        $region16: #{tpu_custom_call.1} parent=11 // pred_fallthru
          _
        // Predicated region
        $region17: #{tpu_custom_call.1} parent=11 // pred_check
          %p168 = pneg %p82
        $region18: #{tpu_custom_call.1} parent=11 // pred_check_branch
          %170 = sbr.rel (%p168) target = $region20
        $region19: #{tpu_custom_call.1} parent=11 // pred_region
          _
        $region20: #{tpu_custom_call.1} parent=11 // pred_fallthru
          _
        // Predicated region
        $region21: #{tpu_custom_call.1} parent=11 // pred_check
          %p171 = pneg %p103
        $region22: #{tpu_custom_call.1} parent=11 // pred_check_branch
          %173 = sbr.rel (%p171) target = $region24
        $region23: #{tpu_custom_call.1} parent=11 // pred_region
          _
        $region24: #{tpu_custom_call.1} parent=11 // pred_fallthru
          _
        // Predicated region
        $region25: #{tpu_custom_call.1} parent=11 // pred_check
          %p174 = pneg %p124
        $region26: #{tpu_custom_call.1} parent=11 // pred_check_branch
          %176 = sbr.rel (%p174) target = $region28
        $region27: #{tpu_custom_call.1} parent=11 // pred_region
          _
        $region28: #{tpu_custom_call.1} parent=11 // pred_fallthru
          _
      $region12: #{tpu_custom_call.1} parent=5 // pred_fallthru
        _
      %p177 = scmp.lt.s32.totalorder %s14, 2
      // Predicated region
      $region29: #{tpu_custom_call.1} parent=5 // pred_check
        %p178 = pneg %p177
      $region30: #{tpu_custom_call.1} parent=5 // pred_check_branch
        %180 = sbr.rel (%p178) target = $region32
      $region31: #{tpu_custom_call.1} parent=5 // pred_region
        // Predicated region
        $region33: #{tpu_custom_call.1} parent=31 // pred_check
          %p181 = pneg %p55
        $region34: #{tpu_custom_call.1} parent=31 // pred_check_branch
          %183 = sbr.rel (%p181) target = $region36
        $region35: #{tpu_custom_call.1} parent=31 // pred_region
          %p184 = scmp.lt.s32.totalorder %s14, 1
          %s185 = scalar_select %p184, %s14, 1
          %s186 = smul.addr %s185, 2
          %s187 = scalar_lea.vmem %s1, %s186
        $region36: #{tpu_custom_call.1} parent=31 // pred_fallthru
          _
      $region32: #{tpu_custom_call.1} parent=5 // pred_fallthru
        _
      %p188 = scmp.le.s32.totalorder 1, %s14
      %p189 = scmp.lt.s32.totalorder %s14, 3
      %p190 = pnand %p188, %p189
      %p191 = pneg %p190
      // Predicated region
      $region37: #{tpu_custom_call.1} parent=5 // pred_check
        _
      $region38: #{tpu_custom_call.1} parent=5 // pred_check_branch
        %193 = sbr.rel (%p190) target = $region40
      $region39: #{tpu_custom_call.1} parent=5 // pred_region
        %s194 = ssub.s32 %s14, 1
        %p195 = pneg %p35
        %p196 = pneg %p32
        %p197 = scmp.lt.s32.totalorder %s19, 1
        %s198 = scalar_select %p197, %s19, 1
        %s199 = smul.addr %s198, 2
        %s200 = scalar_lea.vmem %s1, %s199
        %p201 = pneg %p61
        %p202 = pneg %p58
        %p203 = pneg %p82
        %p204 = pneg %p79
        %p205 = pneg %p103
        %p206 = pneg %p100
        %p207 = pneg %p124
        %p208 = pneg %p121
        %p209 = pneg %p150
        %p210 = pneg %p147
        %s211 = sand.u32 %s137, 1
        %s212 = scalar_lea.sflag [#allocation3], %s211
        %s213 = sand.u32 %s137, 1
        %s214 = smul.addr %s213, 8
        %s215 = scalar_lea.vmem [#allocation2], %s214
        %p216 = scmp.lt.s32.totalorder %s19, 1
        %s217 = scalar_select %p216, %s19, 1
        %s218 = smul.addr %s217, 2
        %s219 = scalar_lea.vmem %s1, %s218
        %v221 = vld [vmem:[%s0] sm:$0xff]
        %v222 = vld [vmem:[%s0 + $0x8] sm:$0xff]
        %s223 = smul.u32 %s19, 8
        %s224 = scalar_lea.vmem %s0, %s223
        %v225 = vld [vmem:[%s224] sm:$0xff]
        %v226 = vld [vmem:[%s2] sm:$0xff]
        %vm227 = vcmask 64512
        %v229 = vsel %vm227, %v221, 0
        %v232 = vsel %vm227, %v222, 0
        %234 = vmatprep.subr.mxu0 0.0
        %235 = vmatpush1.msra.mxu0 %v226
        %236 = vmatprep.subr.mxu0 0.0
        %237 = vmatpush1.msra.mxu0 0.0
        %238 = vmatprep.subr.mxu0 0.0
        %239 = vmatpush1.msra.mxu0 0.0
        %240 = vmatprep.subr.mxu0 0.0
        %241 = vmatpush1.msra.mxu0 0.0
        %242 = vmatprep.subr.mxu0 0.0
        %243 = vmatpush1.msra.mxu0 0.0
        %244 = vmatprep.subr.mxu0 0.0
        %245 = vmatpush1.msra.mxu0 0.0
        %246 = vmatprep.subr.mxu0 0.0
        %247 = vmatpush1.msra.mxu0 0.0
        %248 = vmatprep.subr.mxu0 0.0
        %249 = vmatpush1.msra.mxu0 0.0
        %250 = vmatprep.subr.mxu0 0.0
        %251 = vmatpush1.msra.mxu0 0.0
        %252 = vmatprep.subr.mxu0 0.0
        %253 = vmatpush1.msra.mxu0 0.0
        %254 = vmatprep.subr.mxu0 0.0
        %255 = vmatpush1.msra.mxu0 0.0
        %256 = vmatprep.subr.mxu0 0.0
        %257 = vmatpush1.msra.mxu0 0.0
        %258 = vmatprep.subr.mxu0 0.0
        %259 = vmatpush1.msra.mxu0 0.0
        %260 = vmatprep.subr.mxu0 0.0
        %261 = vmatpush1.msra.mxu0 0.0
        %262 = vmatprep.subr.mxu0 0.0
        %263 = vmatpush1.msra.mxu0 0.0
        %264 = vmatprep.subr.mxu0 0.0
        %265 = vmatpush1.msra.mxu0 0.0
        %266 = vmatprep.subr.mxu0 0.0
        %267 = vmatpush1.msra.mxu0 0.0
        %268 = vmatprep.subr.mxu0 0.0
        %269 = vmatpush1.msra.mxu0 0.0
        %270 = vmatprep.subr.mxu0 0.0
        %271 = vmatpush1.msra.mxu0 0.0
        %272 = vmatprep.subr.mxu0 0.0
        %273 = vmatpush1.msra.mxu0 0.0
        %274 = vmatprep.subr.mxu0 0.0
        %275 = vmatpush1.msra.mxu0 0.0
        %276 = vmatprep.subr.mxu0 0.0
        %277 = vmatpush1.msra.mxu0 0.0
        %278 = vmatprep.subr.mxu0 0.0
        %279 = vmatpush1.msra.mxu0 0.0
        %280 = vmatprep.subr.mxu0 0.0
        %281 = vmatpush1.msra.mxu0 0.0
        %282 = vmatprep.subr.mxu0 0.0
        %283 = vmatpush1.msra.mxu0 0.0
        %284 = vmatprep.subr.mxu0 0.0
        %285 = vmatpush1.msra.mxu0 0.0
        %286 = vmatprep.subr.mxu0 0.0
        %287 = vmatpush1.msra.mxu0 0.0
        %288 = vmatprep.subr.mxu0 0.0
        %289 = vmatpush1.msra.mxu0 0.0
        %290 = vmatprep.subr.mxu0 0.0
        %291 = vmatpush1.msra.mxu0 0.0
        %292 = vmatprep.subr.mxu0 0.0
        %293 = vmatpush1.msra.mxu0 0.0
        %294 = vmatprep.subr.mxu0 0.0
        %295 = vmatpush1.msra.mxu0 0.0
        %296 = vmatprep.subr.mxu0 0.0
        %297 = vmatpush1.msra.mxu0 0.0
        %298 = vmatprep.mubr.f32.mxu0 0.0
        %299 = vmatmul.mubr.f32.gmra.mrb[0].mxu0 %v229
        %v300 = vpop.f32.mrb[0].mxu0
        %v301 = vadd.f32 0.0, %v300
        %v302 = vpop.f32.mrb[0].mxu0
        %303 = vmatprep.mubr.f32.mxu0 0.0
        %304 = vmatmul.mubr.f32.gmra.mrb[0].mxu0 %v232
        %v305 = vpop.f32.mrb[0].mxu0
        %v306 = vadd.f32 0.0, %v305
        %v307 = vpop.f32.mrb[0].mxu0
        %308 = vdwg.mxu0
        %v309 = vpack.c.bf16 %v306, %v301
        %v310 = vld [vmem:[%s3] sm:$0xf]
        %v312 = vsel %vm227, %v310, 0
        %314 = vmatprep.subr.mxu0 0.0
        %315 = vmatpush1.xpose.msra.mxu0 %v229
        %316 = vmatprep.subr.mxu0 0.0
        %317 = vmatpush1.xpose.msra.mxu0 %v232
        %318 = vmatprep.subr.mxu0 0.0
        %319 = vmatpush1.xpose.msra.mxu0 0.0
        %320 = vmatprep.subr.mxu0 0.0
        %321 = vmatpush1.xpose.msra.mxu0 0.0
        %322 = vmatprep.subr.mxu0 0.0
        %323 = vmatpush1.xpose.msra.mxu0 0.0
        %324 = vmatprep.subr.mxu0 0.0
        %325 = vmatpush1.xpose.msra.mxu0 0.0
        %326 = vmatprep.subr.mxu0 0.0
        %327 = vmatpush1.xpose.msra.mxu0 0.0
        %328 = vmatprep.subr.mxu0 0.0
        %329 = vmatpush1.xpose.msra.mxu0 0.0
        %330 = vmatprep.subr.mxu0 0.0
        %331 = vmatpush1.xpose.msra.mxu0 0.0
        %332 = vmatprep.subr.mxu0 0.0
        %333 = vmatpush1.xpose.msra.mxu0 0.0
        %334 = vmatprep.subr.mxu0 0.0
        %335 = vmatpush1.xpose.msra.mxu0 0.0
        %336 = vmatprep.subr.mxu0 0.0
        %337 = vmatpush1.xpose.msra.mxu0 0.0
        %338 = vmatprep.subr.mxu0 0.0
        %339 = vmatpush1.xpose.msra.mxu0 0.0
        %340 = vmatprep.subr.mxu0 0.0
        %341 = vmatpush1.xpose.msra.mxu0 0.0
        %342 = vmatprep.subr.mxu0 0.0
        %343 = vmatpush1.xpose.msra.mxu0 0.0
        %344 = vmatprep.subr.mxu0 0.0
        %345 = vmatpush1.xpose.msra.mxu0 0.0
        %346 = vmatprep.subr.mxu0 0.0
        %347 = vmatpush1.xpose.msra.mxu0 0.0
        %348 = vmatprep.subr.mxu0 0.0
        %349 = vmatpush1.xpose.msra.mxu0 0.0
        %350 = vmatprep.subr.mxu0 0.0
        %351 = vmatpush1.xpose.msra.mxu0 0.0
        %352 = vmatprep.subr.mxu0 0.0
        %353 = vmatpush1.xpose.msra.mxu0 0.0
        %354 = vmatprep.subr.mxu0 0.0
        %355 = vmatpush1.xpose.msra.mxu0 0.0
        %356 = vmatprep.subr.mxu0 0.0
        %357 = vmatpush1.xpose.msra.mxu0 0.0
        %358 = vmatprep.subr.mxu0 0.0
        %359 = vmatpush1.xpose.msra.mxu0 0.0
        %360 = vmatprep.subr.mxu0 0.0
        %361 = vmatpush1.xpose.msra.mxu0 0.0
        %362 = vmatprep.subr.mxu0 0.0
        %363 = vmatpush1.xpose.msra.mxu0 0.0
        %364 = vmatprep.subr.mxu0 0.0
        %365 = vmatpush1.xpose.msra.mxu0 0.0
        %366 = vmatprep.subr.mxu0 0.0
        %367 = vmatpush1.xpose.msra.mxu0 0.0
        %368 = vmatprep.subr.mxu0 0.0
        %369 = vmatpush1.xpose.msra.mxu0 0.0
        %370 = vmatprep.subr.mxu0 0.0
        %371 = vmatpush1.xpose.msra.mxu0 0.0
        %372 = vmatprep.subr.mxu0 0.0
        %373 = vmatpush1.xpose.msra.mxu0 0.0
        %374 = vmatprep.subr.mxu0 0.0
        %375 = vmatpush1.xpose.msra.mxu0 0.0
        %376 = vmatprep.subr.mxu0 0.0
        %377 = vmatpush1.xpose.msra.mxu0 0.0
        %378 = vmatprep.mubr.f32.mxu0 0.0
        %379 = vmatmul.mubr.f32.gmra.mrb[0].mxu0 %v312
        %v380 = vpop.f32.mrb[0].mxu0
        %v381 = vadd.f32 0.0, %v380
        %v382 = vpop.f32.mrb[0].mxu0
        %383 = vdwg.mxu0
        %v384 = vld [vmem:[%s4] sm:$0xff]
        %v386 = vsel %vm227, %v225, 0
        %388 = vmatprep.subr.mxu0 0.0
        %389 = vmatpush1.msra.mxu0 %v384
        %390 = vmatprep.subr.mxu0 0.0
        %391 = vmatpush1.msra.mxu0 0.0
        %392 = vmatprep.subr.mxu0 0.0
        %393 = vmatpush1.msra.mxu0 0.0
        %394 = vmatprep.subr.mxu0 0.0
        %395 = vmatpush1.msra.mxu0 0.0
        %396 = vmatprep.subr.mxu0 0.0
        %397 = vmatpush1.msra.mxu0 0.0
        %398 = vmatprep.subr.mxu0 0.0
        %399 = vmatpush1.msra.mxu0 0.0
        %400 = vmatprep.subr.mxu0 0.0
        %401 = vmatpush1.msra.mxu0 0.0
        %402 = vmatprep.subr.mxu0 0.0
        %403 = vmatpush1.msra.mxu0 0.0
        %404 = vmatprep.subr.mxu0 0.0
        %405 = vmatpush1.msra.mxu0 0.0
        %406 = vmatprep.subr.mxu0 0.0
        %407 = vmatpush1.msra.mxu0 0.0
        %408 = vmatprep.subr.mxu0 0.0
        %409 = vmatpush1.msra.mxu0 0.0
        %410 = vmatprep.subr.mxu0 0.0
        %411 = vmatpush1.msra.mxu0 0.0
        %412 = vmatprep.subr.mxu0 0.0
        %413 = vmatpush1.msra.mxu0 0.0
        %414 = vmatprep.subr.mxu0 0.0
        %415 = vmatpush1.msra.mxu0 0.0
        %416 = vmatprep.subr.mxu0 0.0
        %417 = vmatpush1.msra.mxu0 0.0
        %418 = vmatprep.subr.mxu0 0.0
        %419 = vmatpush1.msra.mxu0 0.0
        %420 = vmatprep.subr.mxu0 0.0
        %421 = vmatpush1.msra.mxu0 0.0
        %422 = vmatprep.subr.mxu0 0.0
        %423 = vmatpush1.msra.mxu0 0.0
        %424 = vmatprep.subr.mxu0 0.0
        %425 = vmatpush1.msra.mxu0 0.0
        %426 = vmatprep.subr.mxu0 0.0
        %427 = vmatpush1.msra.mxu0 0.0
        %428 = vmatprep.subr.mxu0 0.0
        %429 = vmatpush1.msra.mxu0 0.0
        %430 = vmatprep.subr.mxu0 0.0
        %431 = vmatpush1.msra.mxu0 0.0
        %432 = vmatprep.subr.mxu0 0.0
        %433 = vmatpush1.msra.mxu0 0.0
        %434 = vmatprep.subr.mxu0 0.0
        %435 = vmatpush1.msra.mxu0 0.0
        %436 = vmatprep.subr.mxu0 0.0
        %437 = vmatpush1.msra.mxu0 0.0
        %438 = vmatprep.subr.mxu0 0.0
        %439 = vmatpush1.msra.mxu0 0.0
        %440 = vmatprep.subr.mxu0 0.0
        %441 = vmatpush1.msra.mxu0 0.0
        %442 = vmatprep.subr.mxu0 0.0
        %443 = vmatpush1.msra.mxu0 0.0
        %444 = vmatprep.subr.mxu0 0.0
        %445 = vmatpush1.msra.mxu0 0.0
        %446 = vmatprep.subr.mxu0 0.0
        %447 = vmatpush1.msra.mxu0 0.0
        %448 = vmatprep.subr.mxu0 0.0
        %449 = vmatpush1.msra.mxu0 0.0
        %450 = vmatprep.subr.mxu0 0.0
        %451 = vmatpush1.msra.mxu0 0.0
        %452 = vmatprep.mubr.f32.mxu0 0.0
        %453 = vmatmul.mubr.f32.gmra.mrb[0].mxu0 %v386
        %v454 = vpop.f32.mrb[0].mxu0
        %v455 = vadd.f32 0.0, %v454
        %v456 = vpop.f32.mrb[0].mxu0
        %457 = vdwg.mxu0
        %v458 = vld [vmem:[%s219] sm:$0x3]
        %v459 = vunpack.c.0.s8 %v458
        %v460 = vcvt.s32.f32 %v459
        %vm461 = vcmp.gt.f32.partialorder %v460, 0.0
        %v462 = vsel %vm461, 0.0, -1e+30
        %464 = vset.pattern.permute.xlu0 0
        %465 = vperm.xlu0 %464, %v455
        %v466 = vpop.permute.xlu0 %465
        %v468 = vlaneseq
        %v469 = vshrl.u32 %v468, 7
        %v470 = vsub.s32 0, %v469
        %v471 = vrot.slane %v381, %v470
        %v472 = vadd.f32 %v466, %v471
        %vm473 = vcmp.ge.f32.partialorder %v472, 0.0
        %v474 = vmul.f32 %v472, 0.01
        %v475 = vsel %vm473, %v472, %v474
        %v476 = vadd.f32 %v475, %v462
        %vm477 = vcmask 130048
        %v478 = vsel %vm477, %v476, -inf
        %479 = vmax.xlane.f32.xlu0 %v478
        %v480 = vpop.xlane.xlu0 %479
        %v481 = vsub.f32 %v476, %v480
        %v482 = vmul.f32 %v481, 1.442695
        %v483 = vpow.pop %v482
        %v484 = vsel %vm477, %v483, 0.0
        %485 = vadd.xlane.f32.xlu0 %v484
        %v486 = vpop.xlane.xlu0 %485
        %v487 = vrcp.pop %v486
        %v488 = vmul.f32 %v483, %v487
        %v489 = vpack.c.bf16 %v488, %v488
        %v491 = vsel %vm477, %v489, 0
        %493 = vmatprep.subr.bf16.mxu0 0
        %494 = vmatpush1.bf16.msra.mxu0 %v309
        %495 = vmatprep.subr.bf16.mxu0 0
        %496 = vmatpush1.bf16.msra.mxu0 0
        %497 = vmatprep.subr.bf16.mxu0 0
        %498 = vmatpush1.bf16.msra.mxu0 0
        %499 = vmatprep.subr.bf16.mxu0 0
        %500 = vmatpush1.bf16.msra.mxu0 0
        %501 = vmatprep.subr.bf16.mxu0 0
        %502 = vmatpush1.bf16.msra.mxu0 0
        %503 = vmatprep.subr.bf16.mxu0 0
        %504 = vmatpush1.bf16.msra.mxu0 0
        %505 = vmatprep.subr.bf16.mxu0 0
        %506 = vmatpush1.bf16.msra.mxu0 0
        %507 = vmatprep.subr.bf16.mxu0 0
        %508 = vmatpush1.bf16.msra.mxu0 0
        %509 = vmatprep.subr.bf16.mxu0 0
        %510 = vmatpush1.bf16.msra.mxu0 0
        %511 = vmatprep.subr.bf16.mxu0 0
        %512 = vmatpush1.bf16.msra.mxu0 0
        %513 = vmatprep.subr.bf16.mxu0 0
        %514 = vmatpush1.bf16.msra.mxu0 0
        %515 = vmatprep.subr.bf16.mxu0 0
        %516 = vmatpush1.bf16.msra.mxu0 0
        %517 = vmatprep.subr.bf16.mxu0 0
        %518 = vmatpush1.bf16.msra.mxu0 0
        %519 = vmatprep.subr.bf16.mxu0 0
        %520 = vmatpush1.bf16.msra.mxu0 0
        %521 = vmatprep.subr.bf16.mxu0 0
        %522 = vmatpush1.bf16.msra.mxu0 0
        %523 = vmatprep.subr.bf16.mxu0 0
        %524 = vmatpush1.bf16.msra.mxu0 0
        %525 = vmatprep.mubr.bf16.mxu0 0
        %526 = vmatmul.mubr.bf16.gmra.mrb[0].mxu0 %v491
        %v527 = vpop.f32.mrb[0].mxu0
        %v528 = vadd.f32 0.0, %v527
        %v529 = vpop.f32.mrb[0].mxu0
        %v530 = vpop.f32.mrb[0].mxu0
        %v531 = vpop.f32.mrb[0].mxu0
        %532 = vdwg.mxu0
        %533 = vset.pattern.permute.xlu0 1
        %534 = vperm.xlu0 %533, %v455
        %v535 = vpop.permute.xlu0 %534
        %v537 = vlaneseq
        %v538 = vshrl.u32 %v537, 7
        %v539 = vsub.s32 1, %v538
        %v540 = vrot.slane %v381, %v539
        %v541 = vadd.f32 %v535, %v540
        %vm542 = vcmp.ge.f32.partialorder %v541, 0.0
        %v543 = vmul.f32 %v541, 0.01
        %v544 = vsel %vm542, %v541, %v543
        %v545 = vadd.f32 %v544, %v462
        %v546 = vsel %vm477, %v545, -inf
        %547 = vmax.xlane.f32.xlu0 %v546
        %v548 = vpop.xlane.xlu0 %547
        %v549 = vsub.f32 %v545, %v548
        %v550 = vmul.f32 %v549, 1.442695
        %v551 = vpow.pop %v550
        %v552 = vsel %vm477, %v551, 0.0
        %553 = vadd.xlane.f32.xlu0 %v552
        %v554 = vpop.xlane.xlu0 %553
        %v555 = vrcp.pop %v554
        %v556 = vmul.f32 %v551, %v555
        %v557 = vpack.c.bf16 %v556, %v556
        %559 = vrot.lane.b32.xlu0 %v309, 120
        %v560 = vpop.permute.xlu0 %559
        %v563 = vsel %vm477, %v557, 0
        %565 = vmatprep.subr.bf16.mxu0 0
        %566 = vmatpush1.bf16.msra.mxu0 %v560
        %567 = vmatprep.subr.bf16.mxu0 0
        %568 = vmatpush1.bf16.msra.mxu0 0
        %569 = vmatprep.subr.bf16.mxu0 0
        %570 = vmatpush1.bf16.msra.mxu0 0
        %571 = vmatprep.subr.bf16.mxu0 0
        %572 = vmatpush1.bf16.msra.mxu0 0
        %573 = vmatprep.subr.bf16.mxu0 0
        %574 = vmatpush1.bf16.msra.mxu0 0
        %575 = vmatprep.subr.bf16.mxu0 0
        %576 = vmatpush1.bf16.msra.mxu0 0
        %577 = vmatprep.subr.bf16.mxu0 0
        %578 = vmatpush1.bf16.msra.mxu0 0
        %579 = vmatprep.subr.bf16.mxu0 0
        %580 = vmatpush1.bf16.msra.mxu0 0
        %581 = vmatprep.subr.bf16.mxu0 0
        %582 = vmatpush1.bf16.msra.mxu0 0
        %583 = vmatprep.subr.bf16.mxu0 0
        %584 = vmatpush1.bf16.msra.mxu0 0
        %585 = vmatprep.subr.bf16.mxu0 0
        %586 = vmatpush1.bf16.msra.mxu0 0
        %587 = vmatprep.subr.bf16.mxu0 0
        %588 = vmatpush1.bf16.msra.mxu0 0
        %589 = vmatprep.subr.bf16.mxu0 0
        %590 = vmatpush1.bf16.msra.mxu0 0
        %591 = vmatprep.subr.bf16.mxu0 0
        %592 = vmatpush1.bf16.msra.mxu0 0
        %593 = vmatprep.subr.bf16.mxu0 0
        %594 = vmatpush1.bf16.msra.mxu0 0
        %595 = vmatprep.subr.bf16.mxu0 0
        %596 = vmatpush1.bf16.msra.mxu0 0
        %597 = vmatprep.mubr.bf16.mxu0 0
        %598 = vmatmul.mubr.bf16.gmra.mrb[0].mxu0 %v563
        %v599 = vpop.f32.mrb[0].mxu0
        %v600 = vadd.f32 0.0, %v599
        %v601 = vpop.f32.mrb[0].mxu0
        %v602 = vpop.f32.mrb[0].mxu0
        %v603 = vpop.f32.mrb[0].mxu0
        %604 = vdwg.mxu0
        %605 = vset.pattern.permute.xlu0 2
        %606 = vperm.xlu0 %605, %v455
        %v607 = vpop.permute.xlu0 %606
        %v609 = vlaneseq
        %v610 = vshrl.u32 %v609, 7
        %v611 = vsub.s32 2, %v610
        %v612 = vrot.slane %v381, %v611
        %v613 = vadd.f32 %v607, %v612
        %vm614 = vcmp.ge.f32.partialorder %v613, 0.0
        %v615 = vmul.f32 %v613, 0.01
        %v616 = vsel %vm614, %v613, %v615
        %v617 = vadd.f32 %v616, %v462
        %v618 = vsel %vm477, %v617, -inf
        %619 = vmax.xlane.f32.xlu0 %v618
        %v620 = vpop.xlane.xlu0 %619
        %v621 = vsub.f32 %v617, %v620
        %v622 = vmul.f32 %v621, 1.442695
        %v623 = vpow.pop %v622
        %v624 = vsel %vm477, %v623, 0.0
        %625 = vadd.xlane.f32.xlu0 %v624
        %v626 = vpop.xlane.xlu0 %625
        %v627 = vrcp.pop %v626
        %v628 = vmul.f32 %v623, %v627
        %v629 = vpack.c.bf16 %v628, %v628
        %630 = vrot.lane.b32.xlu0 %v309, 112
        %v631 = vpop.permute.xlu0 %630
        %v634 = vsel %vm477, %v629, 0
        %636 = vmatprep.subr.bf16.mxu0 0
        %637 = vmatpush1.bf16.msra.mxu0 %v631
        %638 = vmatprep.subr.bf16.mxu0 0
        %639 = vmatpush1.bf16.msra.mxu0 0
        %640 = vmatprep.subr.bf16.mxu0 0
        %641 = vmatpush1.bf16.msra.mxu0 0
        %642 = vmatprep.subr.bf16.mxu0 0
        %643 = vmatpush1.bf16.msra.mxu0 0
        %644 = vmatprep.subr.bf16.mxu0 0
        %645 = vmatpush1.bf16.msra.mxu0 0
        %646 = vmatprep.subr.bf16.mxu0 0
        %647 = vmatpush1.bf16.msra.mxu0 0
        %648 = vmatprep.subr.bf16.mxu0 0
        %649 = vmatpush1.bf16.msra.mxu0 0
        %650 = vmatprep.subr.bf16.mxu0 0
        %651 = vmatpush1.bf16.msra.mxu0 0
        %652 = vmatprep.subr.bf16.mxu0 0
        %653 = vmatpush1.bf16.msra.mxu0 0
        %654 = vmatprep.subr.bf16.mxu0 0
        %655 = vmatpush1.bf16.msra.mxu0 0
        %656 = vmatprep.subr.bf16.mxu0 0
        %657 = vmatpush1.bf16.msra.mxu0 0
        %658 = vmatprep.subr.bf16.mxu0 0
        %659 = vmatpush1.bf16.msra.mxu0 0
        %660 = vmatprep.subr.bf16.mxu0 0
        %661 = vmatpush1.bf16.msra.mxu0 0
        %662 = vmatprep.subr.bf16.mxu0 0
        %663 = vmatpush1.bf16.msra.mxu0 0
        %664 = vmatprep.subr.bf16.mxu0 0
        %665 = vmatpush1.bf16.msra.mxu0 0
        %666 = vmatprep.subr.bf16.mxu0 0
        %667 = vmatpush1.bf16.msra.mxu0 0
        %668 = vmatprep.mubr.bf16.mxu0 0
        %669 = vmatmul.mubr.bf16.gmra.mrb[0].mxu0 %v634
        %v670 = vpop.f32.mrb[0].mxu0
        %v671 = vadd.f32 0.0, %v670
        %v672 = vpop.f32.mrb[0].mxu0
        %v673 = vpop.f32.mrb[0].mxu0
        %v674 = vpop.f32.mrb[0].mxu0
        %675 = vdwg.mxu0
        %676 = vset.pattern.permute.xlu0 3
        %677 = vperm.xlu0 %676, %v455
        %v678 = vpop.permute.xlu0 %677
        %v680 = vlaneseq
        %v681 = vshrl.u32 %v680, 7
        %v682 = vsub.s32 3, %v681
        %v683 = vrot.slane %v381, %v682
        %v684 = vadd.f32 %v678, %v683
        %vm685 = vcmp.ge.f32.partialorder %v684, 0.0
        %v686 = vmul.f32 %v684, 0.01
        %v687 = vsel %vm685, %v684, %v686
        %v688 = vadd.f32 %v687, %v462
        %v689 = vsel %vm477, %v688, -inf
        %690 = vmax.xlane.f32.xlu0 %v689
        %v691 = vpop.xlane.xlu0 %690
        %v692 = vsub.f32 %v688, %v691
        %v693 = vmul.f32 %v692, 1.442695
        %v694 = vpow.pop %v693
        %v695 = vsel %vm477, %v694, 0.0
        %696 = vadd.xlane.f32.xlu0 %v695
        %v697 = vpop.xlane.xlu0 %696
        %v698 = vrcp.pop %v697
        %v699 = vmul.f32 %v694, %v698
        %v700 = vpack.c.bf16 %v699, %v699
        %701 = vrot.lane.b32.xlu0 %v309, 104
        %v702 = vpop.permute.xlu0 %701
        %v705 = vsel %vm477, %v700, 0
        %707 = vmatprep.subr.bf16.mxu0 0
        %708 = vmatpush1.bf16.msra.mxu0 %v702
        %709 = vmatprep.subr.bf16.mxu0 0
        %710 = vmatpush1.bf16.msra.mxu0 0
        %711 = vmatprep.subr.bf16.mxu0 0
        %712 = vmatpush1.bf16.msra.mxu0 0
        %713 = vmatprep.subr.bf16.mxu0 0
        %714 = vmatpush1.bf16.msra.mxu0 0
        %715 = vmatprep.subr.bf16.mxu0 0
        %716 = vmatpush1.bf16.msra.mxu0 0
        %717 = vmatprep.subr.bf16.mxu0 0
        %718 = vmatpush1.bf16.msra.mxu0 0
        %719 = vmatprep.subr.bf16.mxu0 0
        %720 = vmatpush1.bf16.msra.mxu0 0
        %721 = vmatprep.subr.bf16.mxu0 0
        %722 = vmatpush1.bf16.msra.mxu0 0
        %723 = vmatprep.subr.bf16.mxu0 0
        %724 = vmatpush1.bf16.msra.mxu0 0
        %725 = vmatprep.subr.bf16.mxu0 0
        %726 = vmatpush1.bf16.msra.mxu0 0
        %727 = vmatprep.subr.bf16.mxu0 0
        %728 = vmatpush1.bf16.msra.mxu0 0
        %729 = vmatprep.subr.bf16.mxu0 0
        %730 = vmatpush1.bf16.msra.mxu0 0
        %731 = vmatprep.subr.bf16.mxu0 0
        %732 = vmatpush1.bf16.msra.mxu0 0
        %733 = vmatprep.subr.bf16.mxu0 0
        %734 = vmatpush1.bf16.msra.mxu0 0
        %735 = vmatprep.subr.bf16.mxu0 0
        %736 = vmatpush1.bf16.msra.mxu0 0
        %737 = vmatprep.subr.bf16.mxu0 0
        %738 = vmatpush1.bf16.msra.mxu0 0
        %739 = vmatprep.mubr.bf16.mxu0 0
        %740 = vmatmul.mubr.bf16.gmra.mrb[0].mxu0 %v705
        %v741 = vpop.f32.mrb[0].mxu0
        %v742 = vadd.f32 0.0, %v741
        %v743 = vpop.f32.mrb[0].mxu0
        %v744 = vpop.f32.mrb[0].mxu0
        %v745 = vpop.f32.mrb[0].mxu0
        %746 = vdwg.mxu0
        %748 = vrot.lane.b32.xlu0 %v600, 8
        %v749 = vpop.permute.xlu0 %748
        %752 = vrot.lane.b32.xlu0 %v671, 16
        %v753 = vpop.permute.xlu0 %752
        %756 = vrot.lane.b32.xlu0 %v742, 24
        %v757 = vpop.permute.xlu0 %756
        %v759 = vsel %vm227, %v528, %v749
        %v760 = vsel %vm477, %v759, %v753
        %vm761 = vcmask 195584
        %v762 = vsel %vm761, %v760, %v757
        %vm763 = vcmask 261120
        %764 = vst.msk [vmem:[%s215] sm:$0xff] %vm763, %v762
        %s765 = sand.u32 %s137, 1
        %s766 = scalar_lea.sflag [#allocation3], %s765
        %s767 = sand.u32 %s137, 1
        %s768 = smul.addr %s767, 8
        %s769 = scalar_lea.vmem [#allocation2], %s768
        // Predicated region
        $region41: #{tpu_custom_call.1} parent=39 // pred_check
          %p770 = pneg %p147
        $region42: #{tpu_custom_call.1} parent=39 // pred_check_branch
          %772 = sbr.rel (%p770) target = $region44
        $region43: #{tpu_custom_call.1} parent=39 // pred_region
          %s774 = ssub.s32 128, 128
          %775 = vsyncadd %s766, %s774
          %s776 = smul.addr %s19, 128
          %s777 = scalar_lea.hbm %s5, %s776
          %s779 = sshll.u32 %s769, 4
          %s780 = int_to_ptr.vmem [resolvable:$true] %s779
          %782 = dma.vmem_to_hbm [thread:$0]  %s780, 128, %s777, %s766
        $region44: #{tpu_custom_call.1} parent=39 // pred_fallthru
          _
      $region40: #{tpu_custom_call.1} parent=5 // pred_fallthru
        _
      %p783 = scmp.le.s32.totalorder 2, %s14
      // Predicated region
      $region45: #{tpu_custom_call.1} parent=5 // pred_check
        %p784 = pneg %p783
      $region46: #{tpu_custom_call.1} parent=5 // pred_check_branch
        %786 = sbr.rel (%p784) target = $region48
      $region47: #{tpu_custom_call.1} parent=5 // pred_region
        %s787 = ssub.s32 %s14, 2
        // Predicated region
        $region49: #{tpu_custom_call.1} parent=47 // pred_check
          %p788 = pneg %p153
        $region50: #{tpu_custom_call.1} parent=47 // pred_check_branch
          %790 = sbr.rel (%p788) target = $region52
        $region51: #{tpu_custom_call.1} parent=47 // pred_region
          %s791 = sand.u32 %s138, 1
          %s792 = scalar_lea.sflag [#allocation3], %s791
          %s793 = sand.u32 %s138, 1
          %s794 = smul.addr %s793, 8
          %s795 = scalar_lea.vmem [#allocation2], %s794
          %796 = dma.done %s792, 128
        $region52: #{tpu_custom_call.1} parent=47 // pred_fallthru
          _
      $region48: #{tpu_custom_call.1} parent=5 // pred_fallthru
        _
    $region6: #{tpu_custom_call.1} parent=1 // loop_footer
      %s18 = sadd.s32 1, %s14
    $region7: #{tpu_custom_call.1} parent=1 // loop_footer_branch
      %13 = sbr.rel target = $region3
    $region8: #{tpu_custom_call.1} parent=1 // loop_exit
      _
    %797 = vsyncpa [#allocation3], 1
    %s798 = scalar_lea.sflag [#allocation3], 1
    %799 = vsyncpa %s798, 1

</llo_original>
